<compile_context>
chip_gen: v6e
topology: v6e:2x2x1
jax: 0.10.0
libtpu: 0.0.40
codegen_flags: <defaults>
</compile_context>

<pallas_src>
import math
from functools import partial

import numpy as np
import jax
import jax.numpy as jnp
from jax.experimental import pallas as pl
from jax.experimental.pallas import tpu as pltpu


_VMEM_LIMIT = 40 * 1024 * 1024   # per-call VMEM cap (fits v7x's 64 MiB/TC)
_MM_ROW_CAP = 512                # max A-rows per matmul grid step
_EW_ROW_CAP = 1024               # max rows per elementwise grid step


def _ceil_to(x, m):
    return (x + m - 1) // m * m


def _pick_tile(mp, cap):
    """Largest multiple of 8 <= cap dividing mp (mp itself if mp <= cap)."""
    if mp <= cap:
        return mp
    t = cap - (cap % 8)
    while t >= 8:
        if mp % t == 0:
            return t
        t -= 8
    return mp


# ----------------------------------------------------------------------------
# Fused matmul kernel:  out = epilogue( prologue(A) @ B )
#   prologue (optional): relu(A * p_scale + p_shift)   (pre-conv BN + ReLU)
#   epilogue: 'none' | 'bias' | 'bnrelu' | 'add' | 'mask'
# ----------------------------------------------------------------------------

def _make_mm_kernel(has_pro, epilogue):
    def kernel(*refs):
        i = 0
        a_ref = refs[i]; i += 1
        b_ref = refs[i]; i += 1
        if has_pro:
            ps_ref = refs[i]; pb_ref = refs[i + 1]; i += 2
        es_ref = eb_ref = e_ref = None
        if epilogue == 'bnrelu':
            es_ref = refs[i]; eb_ref = refs[i + 1]; i += 2
        elif epilogue in ('add', 'mask', 'bias'):
            e_ref = refs[i]; i += 1
        o_ref = refs[i]

        a = a_ref[...]
        if has_pro:
            a = jnp.maximum(a.astype(jnp.float32) * ps_ref[...] + pb_ref[...],
                            0.0)
        a = a.astype(b_ref.dtype)
        acc = jnp.dot(a, b_ref[...], preferred_element_type=jnp.float32)
        if epilogue == 'bnrelu':
            acc = jnp.maximum(acc * es_ref[...] + eb_ref[...], 0.0)
        elif epilogue == 'add':
            acc = acc + e_ref[...].astype(jnp.float32)
        elif epilogue == 'mask':
            acc = (1.0 + jax.nn.sigmoid(acc)) * e_ref[...].astype(jnp.float32)
        elif epilogue == 'bias':
            acc = acc + e_ref[...]
        o_ref[...] = acc.astype(o_ref.dtype)
    return kernel


@partial(jax.jit, static_argnames=('epilogue', 'out_dtype'))
def fused_matmul(a, b, prologue=None, epilogue='none', epi_args=(),
                 out_dtype=jnp.bfloat16):
    """(M,K) @ (K,N) with fused BN/ReLU/residual/sigmoid-mask/bias epilogues."""
    M, K = a.shape
    _, N = b.shape
    Mp = _ceil_to(M, 8)
    tm = _pick_tile(Mp, _MM_ROW_CAP)
    if Mp != M:
        a = jnp.pad(a, ((0, Mp - M), (0, 0)))

    args = [a, b]
    specs = [pl.BlockSpec((tm, K), lambda i: (i, 0)),
             pl.BlockSpec((K, N), lambda i: (0, 0))]

    if prologue is not None:
        ps, pb = prologue
        args += [ps.reshape(1, K).astype(jnp.float32),
                 pb.reshape(1, K).astype(jnp.float32)]
        specs += [pl.BlockSpec((1, K), lambda i: (0, 0)),
                  pl.BlockSpec((1, K), lambda i: (0, 0))]
    if epilogue == 'bnrelu':
        es, eb = epi_args
        args += [es.reshape(1, N).astype(jnp.float32),
                 eb.reshape(1, N).astype(jnp.float32)]
        specs += [pl.BlockSpec((1, N), lambda i: (0, 0)),
                  pl.BlockSpec((1, N), lambda i: (0, 0))]
    elif epilogue in ('add', 'mask'):
        (r,) = epi_args
        if Mp != M:
            r = jnp.pad(r, ((0, Mp - M), (0, 0)))
        args += [r]
        specs += [pl.BlockSpec((tm, N), lambda i: (i, 0))]
    elif epilogue == 'bias':
        (bias,) = epi_args
        args += [bias.reshape(1, N).astype(jnp.float32)]
        specs += [pl.BlockSpec((1, N), lambda i: (0, 0))]

    out = pl.pallas_call(
        _make_mm_kernel(prologue is not None, epilogue),
        out_shape=jax.ShapeDtypeStruct((Mp, N), out_dtype),
        grid=(Mp // tm,),
        in_specs=specs,
        out_specs=pl.BlockSpec((tm, N), lambda i: (i, 0)),
        compiler_params=pltpu.CompilerParams(
            dimension_semantics=("parallel",),
            vmem_limit_bytes=_VMEM_LIMIT),
    )(*args)
    return out[:M] if Mp != M else out


# ----------------------------------------------------------------------------
# Elementwise / pooling Pallas kernels
# ----------------------------------------------------------------------------

def _make_add_kernel(n):
    def kernel(*refs):
        o_ref = refs[n]
        acc = refs[0][...].astype(jnp.float32)
        for k in range(1, n):
            acc = acc + refs[k][...].astype(jnp.float32)
        o_ref[...] = acc.astype(o_ref.dtype)
    return kernel


@jax.jit
def add_nhwc(*xs):
    """Tiled multi-input elementwise add over flattened (rows, channels)."""
    shape = xs[0].shape
    C = shape[-1]
    flat = [x.reshape(-1, C) for x in xs]
    M = flat[0].shape[0]
    Mp = _ceil_to(M, 8)
    tm = _pick_tile(Mp, _EW_ROW_CAP)
    if Mp != M:
        flat = [jnp.pad(f, ((0, Mp - M), (0, 0))) for f in flat]
    out = pl.pallas_call(
        _make_add_kernel(len(xs)),
        out_shape=jax.ShapeDtypeStruct((Mp, C), xs[0].dtype),
        grid=(Mp // tm,),
        in_specs=[pl.BlockSpec((tm, C), lambda i: (i, 0)) for _ in flat],
        out_specs=pl.BlockSpec((tm, C), lambda i: (i, 0)),
        compiler_params=pltpu.CompilerParams(
            dimension_semantics=("parallel",),
            vmem_limit_bytes=_VMEM_LIMIT),
    )(*flat)
    out = out[:M] if Mp != M else out
    return out.reshape(shape)


def _maxpool3x3_kernel(x_ref, o_ref):
    x = x_ref[...]
    hp, wp, _ = x.shape
    hi, wi = hp - 2, wp - 2
    r = x[0:hi, 0:wi, :]
    for ki in range(3):
        for kj in range(3):
            if ki == 0 and kj == 0:
                continue
            r = jnp.maximum(r, x[ki:ki + hi, kj:kj + wi, :])
    o_ref[...] = r


@jax.jit
def maxpool_3x3_s2_p1(x):
    """MaxPool2d(3, 2, 1): Pallas stride-1 window max, XLA stride-2 slice."""
    n, h, w, c = x.shape
    neg = jnp.finfo(x.dtype).min
    xp = jnp.pad(x, ((0, 0), (1, 1), (1, 1), (0, 0)), constant_values=neg)
    outs = []
    for b in range(n):
        s1 = pl.pallas_call(
            _maxpool3x3_kernel,
            out_shape=jax.ShapeDtypeStruct((h, w, c), x.dtype),
            grid=(1,),
            in_specs=[pl.BlockSpec((h + 2, w + 2, c), lambda i: (0, 0, 0))],
            out_specs=pl.BlockSpec((h, w, c), lambda i: (0, 0, 0)),
            compiler_params=pltpu.CompilerParams(
                dimension_semantics=("arbitrary",),
                vmem_limit_bytes=_VMEM_LIMIT),
        )(xp[b])
        outs.append(s1[::2, ::2, :])
    return jnp.stack(outs, axis=0)


def _gap_bnrelu_kernel(x_ref, s_ref, b_ref, o_ref):
    y = jnp.maximum(x_ref[...].astype(jnp.float32) * s_ref[...] + b_ref[...],
                    0.0)
    o_ref[...] = jnp.mean(y, axis=1, keepdims=True)


@jax.jit
def bnrelu_avgpool(x, scale, shift):
    """mpool2 = BatchNorm + ReLU + AvgPool2d(7, 1) fused in one kernel."""
    n, h, w, c = x.shape
    xr = x.reshape(n, h * w, c)
    out = pl.pallas_call(
        _gap_bnrelu_kernel,
        out_shape=jax.ShapeDtypeStruct((n, 1, c), jnp.float32),
        grid=(1,),
        in_specs=[pl.BlockSpec((n, h * w, c), lambda i: (0, 0, 0)),
                  pl.BlockSpec((1, 1, c), lambda i: (0, 0, 0)),
                  pl.BlockSpec((1, 1, c), lambda i: (0, 0, 0))],
        out_specs=pl.BlockSpec((n, 1, c), lambda i: (0, 0, 0)),
        compiler_params=pltpu.CompilerParams(
            dimension_semantics=("arbitrary",),
            vmem_limit_bytes=_VMEM_LIMIT),
    )(xr, scale.reshape(1, 1, c), shift.reshape(1, 1, c))
    return out.reshape(n, c)


# ----------------------------------------------------------------------------
# Conv / upsample wrappers (XLA glue around the Pallas matmul)
# ----------------------------------------------------------------------------

@partial(jax.jit, static_argnames=('stride', 'epilogue'))
def conv1x1(x, w, prologue=None, epilogue='none', epi_args=(), stride=1):
    n, h, wd, c = x.shape
    if stride > 1:
        x = x[:, ::stride, ::stride, :]
    ho, wo = x.shape[1], x.shape[2]
    a = x.reshape(n * ho * wo, c)
    y = fused_matmul(a, w, prologue=prologue, epilogue=epilogue,
                     epi_args=epi_args)
    return y.reshape(n, ho, wo, w.shape[1])


@partial(jax.jit, static_argnames=('kh', 'kw', 'stride', 'padding', 'epilogue'))
def conv_kxk(x, w, kh, kw, stride, padding, epilogue='none', epi_args=()):
    n, h, wd, c = x.shape
    if padding:
        x = jnp.pad(x, ((0, 0), (padding, padding), (padding, padding), (0, 0)))
    hp, wp = h + 2 * padding, wd + 2 * padding
    ho = (hp - kh) // stride + 1
    wo = (wp - kw) // stride + 1
    cols = []
    for ki in range(kh):
        for kj in range(kw):
            cols.append(x[:, ki:ki + stride * (ho - 1) + 1:stride,
                          kj:kj + stride * (wo - 1) + 1:stride, :])
    # TODO(synk): the im2col patch tensor is still materialized in HBM for
    # k>1 convs; folding the taps into the matmul reduction would need
    # in-kernel halo/strided window reads.
    a = jnp.concatenate(cols, axis=-1).reshape(n * ho * wo, kh * kw * c)
    y = fused_matmul(a, w, prologue=None, epilogue=epilogue, epi_args=epi_args)
    return y.reshape(n, ho, wo, w.shape[1])


def _resize_matrix(out_sz, in_sz):
    """Dense bilinear (align_corners=True) interpolation matrix (out, in)."""
    if out_sz == 1:
        src = np.zeros((1,), np.float64)
    else:
        src = np.arange(out_sz, dtype=np.float64) * (in_sz - 1) / (out_sz - 1)
    lo = np.clip(np.floor(src).astype(np.int64), 0, in_sz - 1)
    hi = np.minimum(lo + 1, in_sz - 1)
    frac = src - lo
    r = np.zeros((out_sz, in_sz), np.float32)
    r[np.arange(out_sz), lo] += 1.0 - frac
    r[np.arange(out_sz), hi] += frac
    return r


@partial(jax.jit, static_argnames=('out_h', 'out_w'))
def upsample_bilinear(x, out_h, out_w):
    """UpsamplingBilinear2d(align_corners=True) as two Pallas matmuls."""
    n, h, w, c = x.shape
    if out_h == h and out_w == w:
        return x
    rh = jnp.asarray(_resize_matrix(out_h, h), jnp.bfloat16)
    rw = jnp.asarray(_resize_matrix(out_w, w), jnp.bfloat16)
    outs = []
    for b in range(n):
        t = fused_matmul(rh, x[b].reshape(h, w * c))              # (out_h, w*c)
        t = t.reshape(out_h, w, c).transpose(1, 0, 2).reshape(w, out_h * c)
        o = fused_matmul(rw, t)                                   # (out_w, out_h*c)
        o = o.reshape(out_w, out_h, c).transpose(1, 0, 2)
        outs.append(o)
    return jnp.stack(outs, axis=0)


# ----------------------------------------------------------------------------
# Parameters (deterministic, matching _init_params semantics)
# ----------------------------------------------------------------------------

class Init:
    def __init__(self, seed=0):
        self.key = jax.random.PRNGKey(seed)
        self.count = 0

    def _next(self):
        self.count += 1
        return jax.random.fold_in(self.key, self.count)

    def conv(self, cin, cout, k):
        fan_out = cout * k * k
        std = math.sqrt(2.0 / fan_out)   # kaiming_normal_(mode='fan_out', relu)
        w = jax.random.normal(self._next(), (cout, cin, k, k), jnp.float32) * std
        # torch (Cout,Cin,Kh,Kw) -> pre-transposed matmul layout, bf16
        return jnp.transpose(w, (2, 3, 1, 0)).reshape(
            k * k * cin, cout).astype(jnp.bfloat16)

    def bn(self, c):
        # inference-mode BN with _init_params stats -> scale=1, shift=0
        return jnp.ones((c,), jnp.float32), jnp.zeros((c,), jnp.float32)

    def linear(self, cin, cout):
        w = jax.random.normal(self._next(), (cout, cin), jnp.float32) * 0.01
        return jnp.transpose(w).astype(jnp.bfloat16), jnp.zeros((cout,), jnp.float32)


def make_residual_block_params(init, cin, cout, stride=1):
    mid = cout // 4
    bn1_s, bn1_b = init.bn(cin)
    w1 = init.conv(cin, mid, 1)
    bn2_s, bn2_b = init.bn(mid)
    w2 = init.conv(mid, mid, 3)
    bn3_s, bn3_b = init.bn(mid)
    w3 = init.conv(mid, cout, 1)
    p = dict(stride=stride,
             bn1_s=bn1_s, bn1_b=bn1_b, w1=w1,
             bn2_s=bn2_s, bn2_b=bn2_b, w2=w2,
             bn3_s=bn3_s, bn3_b=bn3_b, w3=w3)
    if cin != cout or stride != 1:
        p['w4'] = init.conv(cin, cout, 1)
    return p


def _mask_params(init, c):
    mbn1_s, mbn1_b = init.bn(c)
    mw1 = init.conv(c, c, 1)
    mbn2_s, mbn2_b = init.bn(c)
    mw2 = init.conv(c, c, 1)
    return dict(mbn1_s=mbn1_s, mbn1_b=mbn1_b, mw1=mw1,
                mbn2_s=mbn2_s, mbn2_b=mbn2_b, mw2=mw2)


def make_attn1_params(init, c):
    rbp = lambda: make_residual_block_params(init, c, c)
    p = dict(first=rbp(), trunk=[rbp(), rbp()],
             sm1=rbp(), skip1=rbp(), sm2=rbp(), skip2=rbp(),
             sm3=[rbp(), rbp()], sm4=rbp(), sm5=rbp(), last=rbp())
    p.update(_mask_params(init, c))
    return p


def make_attn2_params(init, c):
    rbp = lambda: make_residual_block_params(init, c, c)
    p = dict(first=rbp(), trunk=[rbp(), rbp()],
             sm1=rbp(), skip1=rbp(), sm2=[rbp(), rbp()], sm3=rbp(), last=rbp())
    p.update(_mask_params(init, c))
    return p


def make_attn3_params(init, c):
    rbp = lambda: make_residual_block_params(init, c, c)
    p = dict(first=rbp(), trunk=[rbp(), rbp()], sm1=[rbp(), rbp()], last=rbp())
    p.update(_mask_params(init, c))
    return p


def make_model_params(num_classes, seed=0):
    init = Init(seed)
    p = {}
    p['conv1_w'] = init.conv(3, 64, 7)
    p['conv1_bn_s'], p['conv1_bn_b'] = init.bn(64)
    p['rb1'] = make_residual_block_params(init, 64, 256)
    p['am1'] = make_attn1_params(init, 256)
    p['rb2'] = make_residual_block_params(init, 256, 512, 2)
    p['am2'] = make_attn2_params(init, 512)
    p['am2_2'] = make_attn2_params(init, 512)
    p['rb3'] = make_residual_block_params(init, 512, 1024, 2)
    p['am3'] = make_attn3_params(init, 1024)
    p['am3_2'] = make_attn3_params(init, 1024)
    p['am3_3'] = make_attn3_params(init, 1024)
    p['rb4'] = make_residual_block_params(init, 1024, 2048, 2)
    p['rb5'] = make_residual_block_params(init, 2048, 2048)
    p['rb6'] = make_residual_block_params(init, 2048, 2048)
    p['mpool2_bn_s'], p['mpool2_bn_b'] = init.bn(2048)
    p['fc_w'], p['fc_b'] = init.linear(2048, num_classes)
    return p


# ----------------------------------------------------------------------------
# Model blocks
# ----------------------------------------------------------------------------

def residual_block(x, p):
    # conv1 (1x1): prologue = bn1+relu, epilogue = bn2+relu
    out = conv1x1(x, p['w1'], prologue=(p['bn1_s'], p['bn1_b']),
                  epilogue='bnrelu', epi_args=(p['bn2_s'], p['bn2_b']))
    # conv2 (3x3, stride s): epilogue = bn3+relu
    out = conv_kxk(out, p['w2'], kh=3, kw=3, stride=p['stride'], padding=1,
                   epilogue='bnrelu', epi_args=(p['bn3_s'], p['bn3_b']))
    # residual branch
    if 'w4' in p:
        res = conv1x1(x, p['w4'], prologue=(p['bn1_s'], p['bn1_b']),
                      epilogue='none', stride=p['stride'])
    else:
        res = x
    cout = p['w3'].shape[1]
    # conv3 (1x1): epilogue = + residual
    out = conv1x1(out, p['w3'], epilogue='add',
                  epi_args=(res.reshape(-1, cout),))
    return out


def mask_apply(x, trunk, p):
    """out_softmax blocks (bn,relu,1x1,bn,relu,1x1,sigmoid) then (1+m)*trunk."""
    c = trunk.shape[-1]
    m = conv1x1(x, p['mw1'], prologue=(p['mbn1_s'], p['mbn1_b']),
                epilogue='bnrelu', epi_args=(p['mbn2_s'], p['mbn2_b']))
    out = conv1x1(m, p['mw2'], epilogue='mask',
                  epi_args=(trunk.reshape(-1, c),))
    return out


def attention_stage1(x, p):
    x = residual_block(x, p['first'])
    t = x
    for q in p['trunk']:
        t = residual_block(t, q)
    m1 = maxpool_3x3_s2_p1(x)
    s1 = residual_block(m1, p['sm1'])
    skip1 = residual_block(s1, p['skip1'])
    m2 = maxpool_3x3_s2_p1(s1)
    s2 = residual_block(m2, p['sm2'])
    skip2 = residual_block(s2, p['skip2'])
    m3 = maxpool_3x3_s2_p1(s2)
    s3 = m3
    for q in p['sm3']:
        s3 = residual_block(s3, q)
    up3 = upsample_bilinear(s3, out_h=s2.shape[1], out_w=s2.shape[2])
    out = add_nhwc(up3, s2, skip2)
    s4 = residual_block(out, p['sm4'])
    up2 = upsample_bilinear(s4, out_h=s1.shape[1], out_w=s1.shape[2])
    out = add_nhwc(up2, s1, skip1)
    s5 = residual_block(out, p['sm5'])
    up1 = upsample_bilinear(s5, out_h=t.shape[1], out_w=t.shape[2])
    out_interp1 = add_nhwc(up1, t)
    out = mask_apply(out_interp1, t, p)
    return residual_block(out, p['last'])


def attention_stage2(x, p):
    x = residual_block(x, p['first'])
    t = x
    for q in p['trunk']:
        t = residual_block(t, q)
    m1 = maxpool_3x3_s2_p1(x)
    s1 = residual_block(m1, p['sm1'])
    skip1 = residual_block(s1, p['skip1'])
    m2 = maxpool_3x3_s2_p1(s1)
    s2 = m2
    for q in p['sm2']:
        s2 = residual_block(s2, q)
    up2 = upsample_bilinear(s2, out_h=s1.shape[1], out_w=s1.shape[2])
    out = add_nhwc(up2, s1, skip1)
    s3 = residual_block(out, p['sm3'])
    up1 = upsample_bilinear(s3, out_h=t.shape[1], out_w=t.shape[2])
    out_interp1 = add_nhwc(up1, t)
    out = mask_apply(out_interp1, t, p)
    return residual_block(out, p['last'])


def attention_stage3(x, p):
    x = residual_block(x, p['first'])
    t = x
    for q in p['trunk']:
        t = residual_block(t, q)
    m1 = maxpool_3x3_s2_p1(x)
    s1 = m1
    for q in p['sm1']:
        s1 = residual_block(s1, q)
    up1 = upsample_bilinear(s1, out_h=t.shape[1], out_w=t.shape[2])
    out_interp1 = add_nhwc(up1, t)
    out = mask_apply(out_interp1, t, p)
    return residual_block(out, p['last'])


def model_forward(x_nchw, p):
    # layout: NCHW input -> NHWC internal, bf16 activations
    x = jnp.transpose(x_nchw, (0, 2, 3, 1)).astype(jnp.bfloat16)
    out = conv_kxk(x, p['conv1_w'], kh=7, kw=7, stride=2, padding=3,
                   epilogue='bnrelu',
                   epi_args=(p['conv1_bn_s'], p['conv1_bn_b']))
    out = maxpool_3x3_s2_p1(out)
    out = residual_block(out, p['rb1'])
    out = attention_stage1(out, p['am1'])
    out = residual_block(out, p['rb2'])
    out = attention_stage2(out, p['am2'])
    out = attention_stage2(out, p['am2_2'])
    out = residual_block(out, p['rb3'])
    out = attention_stage3(out, p['am3'])
    out = attention_stage3(out, p['am3_2'])
    out = attention_stage3(out, p['am3_3'])
    out = residual_block(out, p['rb4'])
    out = residual_block(out, p['rb5'])
    out = residual_block(out, p['rb6'])
    v = bnrelu_avgpool(out, p['mpool2_bn_s'], p['mpool2_bn_b'])   # (N, 2048) f32
    y = fused_matmul(v.astype(jnp.bfloat16), p['fc_w'],
                     epilogue='bias', epi_args=(p['fc_b'],),
                     out_dtype=jnp.float32)                        # Linear
    return y, v


# ----------------------------------------------------------------------------
# Main
# ----------------------------------------------------------------------------

if __name__ == "__main__":
    num_classes = 16
    # 224x224 is the smallest spatial size consistent with the architecture
    # (AvgPool2d(kernel_size=7) at the end requires a 7x7 final feature map);
    # batch=1 keeps the example small.
    batch = 1
    params = make_model_params(num_classes, seed=0)
    x = jax.random.normal(jax.random.PRNGKey(0), (batch, 3, 224, 224),
                          jnp.float32)
    y, v = model_forward(x, params)
    jax.block_until_ready((y, v))
    assert y.shape == (batch, num_classes), y.shape
    assert v.shape == (batch, 2048), v.shape
    print("KERNEL_OK")
</pallas_src>

<mosaic_0001>
module attributes {stable_mosaic.version = 11 : i64} {
  func.func @kernel(%arg0: i32, %arg1: memref<448x147xbf16, #tpu.memory_space<vmem>>, %arg2: memref<147x64xbf16, #tpu.memory_space<vmem>>, %arg3: memref<1x64xf32, #tpu.memory_space<vmem>>, %arg4: memref<1x64xf32, #tpu.memory_space<vmem>>, %arg5: memref<448x64xbf16, #tpu.memory_space<vmem>>) attributes {dimension_semantics = [#tpu.dimension_semantics<parallel>], iteration_bounds = array<i64: 28>, scalar_prefetch = 0 : i64, scratch_operands = 0 : i64, tpu.core_type = #tpu.core_type<tc>, window_params = [{transform_indices = @transform_0, window_bounds = array<i64: 448, 147>}, {pipeline_mode = #tpu.pipeline_mode<synchronous>, transform_indices = @transform_1, window_bounds = array<i64: 147, 64>}, {pipeline_mode = #tpu.pipeline_mode<synchronous>, transform_indices = @transform_2, window_bounds = array<i64: 1, 64>}, {pipeline_mode = #tpu.pipeline_mode<synchronous>, transform_indices = @transform_3, window_bounds = array<i64: 1, 64>}, {transform_indices = @transform_4, window_bounds = array<i64: 448, 64>}]} {
    %c0 = arith.constant 0 : index
    %c0_0 = arith.constant 0 : index
    %0 = vector.load %arg1[%c0, %c0_0] : memref<448x147xbf16, #tpu.memory_space<vmem>>, vector<448x147xbf16>
    %c0_1 = arith.constant 0 : index
    %c0_2 = arith.constant 0 : index
    %1 = vector.load %arg2[%c0_1, %c0_2] : memref<147x64xbf16, #tpu.memory_space<vmem>>, vector<147x64xbf16>
    %cst = arith.constant dense<0.000000e+00> : vector<448x64xf32>
    %2 = tpu.matmul %0, %1, %cst {dimension_numbers = #tpu.dot_dimension_numbers<[1], [0], [0], [1], [0, 0, 1, 1], [], []>} : vector<448x147xbf16>, vector<147x64xbf16>, vector<448x64xf32> -> vector<448x64xf32>
    %c0_3 = arith.constant 0 : index
    %c0_4 = arith.constant 0 : index
    %3 = vector.load %arg3[%c0_3, %c0_4] : memref<1x64xf32, #tpu.memory_space<vmem>>, vector<1x64xf32>
    %4 = vector.broadcast %3 : vector<1x64xf32> to vector<448x64xf32>
    %5 = arith.mulf %2, %4 : vector<448x64xf32>
    %c0_5 = arith.constant 0 : index
    %c0_6 = arith.constant 0 : index
    %6 = vector.load %arg4[%c0_5, %c0_6] : memref<1x64xf32, #tpu.memory_space<vmem>>, vector<1x64xf32>
    %7 = vector.broadcast %6 : vector<1x64xf32> to vector<448x64xf32>
    %8 = arith.addf %5, %7 : vector<448x64xf32>
    %cst_7 = arith.constant 0.000000e+00 : f32
    %9 = vector.broadcast %cst_7 : f32 to vector<448x64xf32>
    %10 = arith.maximumf %8, %9 : vector<448x64xf32>
    %11 = arith.truncf %10 : vector<448x64xf32> to vector<448x64xbf16>
    %c0_8 = arith.constant 0 : index
    %c0_9 = arith.constant 0 : index
    %12 = vector.load %arg5[%c0_8, %c0_9] : memref<448x64xbf16, #tpu.memory_space<vmem>>, vector<448x64xbf16>
    tpu.vector_store %arg5[%c0_8, %c0_9], %11 {strides = array<i32>} : memref<448x64xbf16, #tpu.memory_space<vmem>>, vector<448x64xbf16>,
    return
  }
  func.func @transform_0(%arg0: i32) -> (i32, i32) {
    %c0_i32 = arith.constant 0 : i32
    %c0_i32_0 = arith.constant 0 : i32
    return %arg0, %c0_i32 : i32, i32
  }
  func.func @transform_1(%arg0: i32) -> (i32, i32) {
    %c0_i32 = arith.constant 0 : i32
    %c0_i32_0 = arith.constant 0 : i32
    %c0_i32_1 = arith.constant 0 : i32
    return %c0_i32, %c0_i32_0 : i32, i32
  }
  func.func @transform_2(%arg0: i32) -> (i32, i32) {
    %c0_i32 = arith.constant 0 : i32
    %c0_i32_0 = arith.constant 0 : i32
    %c0_i32_1 = arith.constant 0 : i32
    return %c0_i32, %c0_i32_0 : i32, i32
  }
  func.func @transform_3(%arg0: i32) -> (i32, i32) {
    %c0_i32 = arith.constant 0 : i32
    %c0_i32_0 = arith.constant 0 : i32
    %c0_i32_1 = arith.constant 0 : i32
    return %c0_i32, %c0_i32_0 : i32, i32
  }
  func.func @transform_4(%arg0: i32) -> (i32, i32) {
    %c0_i32 = arith.constant 0 : i32
    %c0_i32_0 = arith.constant 0 : i32
    return %arg0, %c0_i32 : i32, i32
  }
}

</mosaic_0001>

<llo_original>
// kernel: fused_matmul.1
$region0: #{fused_matmul.1}
  #allocation0 [shape = 'u32[]', space=smem, size = 0x4, offset = 0x4, fixed_abs, tag = 'smem constant byte address 0x4 - core index']
  #allocation1 [shape = 'u32[144,128]{1,0:T(1,128)}', space=vmem, size = 0x12000, scoped, tag = 'internal scratch']
  %s0 = inlined_call_operand.vmem [shape: bf16[12544,147], index: 0, kind: input, shape index: {}]
  %s1 = inlined_call_operand.vmem [shape: bf16[147,64], index: 1, kind: input, shape index: {}]
  %s2 = inlined_call_operand.vmem [shape: f32[1,64], index: 2, kind: input, shape index: {}]
  %s3 = inlined_call_operand.vmem [shape: f32[1,64], index: 3, kind: input, shape index: {}]
  %s4 = inlined_call_operand.vmem [shape: bf16[12544,64], index: 4, kind: output, shape index: {}]
  %s5 = sld [smem:[#allocation0]]
  $region49: #{fused_matmul.1} parent=0
    _
  %s7 = ssub.s32 1, %s5
  %s8 = scalar_select 0, %s7, %s5
  loop: start=0, step=1, limit=30
  $region2: #{fused_matmul.1} parent=0 // loop_pre_header
    _
  $region3: #{fused_matmul.1} parent=0 // loop_header
    %s10 = sphi 0, %s14
    %p11 = scmp.ge.s32.totalorder %s10, 30
    %s20 = sphi 0, %s22
    %s23 = sphi 0, %s20
    %s24 = sphi 0, %s23
    %s40 = sphi 0, %s24
    %s44 = sphi 0, %s44
    %s46 = sphi 0, %s44
    %s47 = sphi 0, %s46
    %s61 = sphi 0, %s47
    %s65 = sphi 0, %s65
    %s67 = sphi 0, %s65
    %s68 = sphi 0, %s67
    %s82 = sphi 0, %s68
    %s86 = sphi 0, %s86
    %s88 = sphi 0, %s86
    %s89 = sphi 0, %s88
    %s103 = sphi 0, %s89
    %s109 = sphi 0, %s111
    %s112 = sphi 0, %s109
    %s113 = sphi 0, %s112
    %s129 = sphi 0, %s113
  $region4: #{fused_matmul.1} parent=0 // loop_header_branch
    %13 = sbr.rel (%p11) target = $region8
  $region5: #{fused_matmul.1} parent=0 // loop_body
    %s15 = ssub.s32 %s10, 1
    %s16 = ssub.s32 %s10, 2
    %s17 = sadd.s32 %s10, 1
    %s18 = ssub.s32 %s10, %s17
    %p19 = scmp.eq.s32.totalorder %s18, 0
    %s21 = sadd.s32 %s20, 1
    %s22 = scalar_select %p19, %s20, %s21
    %p25 = pneg %p19
    %p26 = scmp.eq.s32.totalorder %s10, 27
    %p27 = por %p25, %p26
    %p28 = scmp.ne.s32.totalorder %s20, %s23
    %p29 = scmp.eq.s32.totalorder %s10, 0
    %p30 = por %p28, %p29
    %p31 = scmp.ne.s32.totalorder %s20, %s23
    %p32 = scmp.eq.s32.totalorder %s15, 27
    %p33 = por %p31, %p32
    %p34 = scmp.ne.s32.totalorder %s23, %s24
    %p35 = scmp.eq.s32.totalorder %s15, 0
    %p36 = por %p34, %p35
    %p37 = scmp.ne.s32.totalorder %s23, %s24
    %p38 = scmp.eq.s32.totalorder %s16, 27
    %p39 = por %p37, %p38
    %p41 = scmp.ne.s32.totalorder %s24, %s40
    %p42 = scmp.eq.s32.totalorder %s16, 0
    %p43 = por %p41, %p42
    %s45 = sadd.s32 %s44, 1
    %p48 = scmp.eq.s32.totalorder %s10, 27
    %p49 = scmp.ne.s32.totalorder %s44, %s46
    %p50 = scmp.eq.s32.totalorder %s10, 0
    %p51 = por %p49, %p50
    %p52 = scmp.ne.s32.totalorder %s44, %s46
    %p53 = scmp.eq.s32.totalorder %s15, 27
    %p54 = por %p52, %p53
    %p55 = scmp.ne.s32.totalorder %s46, %s47
    %p56 = scmp.eq.s32.totalorder %s15, 0
    %p57 = por %p55, %p56
    %p58 = scmp.ne.s32.totalorder %s46, %s47
    %p59 = scmp.eq.s32.totalorder %s16, 27
    %p60 = por %p58, %p59
    %p62 = scmp.ne.s32.totalorder %s47, %s61
    %p63 = scmp.eq.s32.totalorder %s16, 0
    %p64 = por %p62, %p63
    %s66 = sadd.s32 %s65, 1
    %p69 = scmp.eq.s32.totalorder %s10, 27
    %p70 = scmp.ne.s32.totalorder %s65, %s67
    %p71 = scmp.eq.s32.totalorder %s10, 0
    %p72 = por %p70, %p71
    %p73 = scmp.ne.s32.totalorder %s65, %s67
    %p74 = scmp.eq.s32.totalorder %s15, 27
    %p75 = por %p73, %p74
    %p76 = scmp.ne.s32.totalorder %s67, %s68
    %p77 = scmp.eq.s32.totalorder %s15, 0
    %p78 = por %p76, %p77
    %p79 = scmp.ne.s32.totalorder %s67, %s68
    %p80 = scmp.eq.s32.totalorder %s16, 27
    %p81 = por %p79, %p80
    %p83 = scmp.ne.s32.totalorder %s68, %s82
    %p84 = scmp.eq.s32.totalorder %s16, 0
    %p85 = por %p83, %p84
    %s87 = sadd.s32 %s86, 1
    %p90 = scmp.eq.s32.totalorder %s10, 27
    %p91 = scmp.ne.s32.totalorder %s86, %s88
    %p92 = scmp.eq.s32.totalorder %s10, 0
    %p93 = por %p91, %p92
    %p94 = scmp.ne.s32.totalorder %s86, %s88
    %p95 = scmp.eq.s32.totalorder %s15, 27
    %p96 = por %p94, %p95
    %p97 = scmp.ne.s32.totalorder %s88, %s89
    %p98 = scmp.eq.s32.totalorder %s15, 0
    %p99 = por %p97, %p98
    %p100 = scmp.ne.s32.totalorder %s88, %s89
    %p101 = scmp.eq.s32.totalorder %s16, 27
    %p102 = por %p100, %p101
    %p104 = scmp.ne.s32.totalorder %s89, %s103
    %p105 = scmp.eq.s32.totalorder %s16, 0
    %p106 = por %p104, %p105
    %s107 = ssub.s32 %s10, %s17
    %p108 = scmp.eq.s32.totalorder %s107, 0
    %s110 = sadd.s32 %s109, 1
    %s111 = scalar_select %p108, %s109, %s110
    %p114 = pneg %p108
    %p115 = scmp.eq.s32.totalorder %s10, 27
    %p116 = por %p114, %p115
    %p117 = scmp.ne.s32.totalorder %s109, %s112
    %p118 = scmp.eq.s32.totalorder %s10, 0
    %p119 = por %p117, %p118
    %p120 = scmp.ne.s32.totalorder %s109, %s112
    %p121 = scmp.eq.s32.totalorder %s15, 27
    %p122 = por %p120, %p121
    %p123 = scmp.ne.s32.totalorder %s112, %s113
    %p124 = scmp.eq.s32.totalorder %s15, 0
    %p125 = por %p123, %p124
    %p126 = scmp.ne.s32.totalorder %s112, %s113
    %p127 = scmp.eq.s32.totalorder %s16, 27
    %p128 = por %p126, %p127
    %p130 = scmp.ne.s32.totalorder %s113, %s129
    %p131 = scmp.eq.s32.totalorder %s16, 0
    %p132 = por %p130, %p131
    %p133 = scmp.le.s32.totalorder 1, %s10
    %p134 = scmp.lt.s32.totalorder %s10, 29
    %p135 = pnand %p133, %p134
    %p136 = pneg %p135
    // Predicated region
    $region9: #{fused_matmul.1} parent=5 // pred_check
      _
    $region10: #{fused_matmul.1} parent=5 // pred_check_branch
      %138 = sbr.rel (%p135) target = $region12
    $region11: #{fused_matmul.1} parent=5 // pred_region
      %s139 = ssub.s32 %s10, 1
      // Predicated region
      $region13: #{fused_matmul.1} parent=11 // pred_check
        %p140 = pneg %p57
      $region14: #{fused_matmul.1} parent=11 // pred_check_branch
        %142 = sbr.rel (%p140) target = $region16
      $region15: #{fused_matmul.1} parent=11 // pred_region
        _
      $region16: #{fused_matmul.1} parent=11 // pred_fallthru
        _
      // Predicated region
      $region17: #{fused_matmul.1} parent=11 // pred_check
        %p143 = pneg %p78
      $region18: #{fused_matmul.1} parent=11 // pred_check_branch
        %145 = sbr.rel (%p143) target = $region20
      $region19: #{fused_matmul.1} parent=11 // pred_region
        _
      $region20: #{fused_matmul.1} parent=11 // pred_fallthru
        _
      // Predicated region
      $region21: #{fused_matmul.1} parent=11 // pred_check
        %p146 = pneg %p99
      $region22: #{fused_matmul.1} parent=11 // pred_check_branch
        %148 = sbr.rel (%p146) target = $region24
      $region23: #{fused_matmul.1} parent=11 // pred_region
        _
      $region24: #{fused_matmul.1} parent=11 // pred_fallthru
        _
    $region12: #{fused_matmul.1} parent=5 // pred_fallthru
      _
    %p149 = scmp.lt.s32.totalorder %s10, 28
    // Predicated region
    $region25: #{fused_matmul.1} parent=5 // pred_check
      %p150 = pneg %p149
    $region26: #{fused_matmul.1} parent=5 // pred_check_branch
      %152 = sbr.rel (%p150) target = $region28
    $region27: #{fused_matmul.1} parent=5 // pred_region
      // Predicated region
      $region29: #{fused_matmul.1} parent=27 // pred_check
        %p153 = pneg %p30
      $region30: #{fused_matmul.1} parent=27 // pred_check_branch
        %155 = sbr.rel (%p153) target = $region32
      $region31: #{fused_matmul.1} parent=27 // pred_region
        %s156 = smul.u32 56, %s10
        %p157 = scmp.lt.s32.totalorder %s156, 1567
        %s158 = scalar_select %p157, %s156, 1567
        %s159 = smul.addr %s158, 2
        %s160 = smul.addr %s159, 4
        %s161 = scalar_lea.vmem %s0, %s160
        %s162 = smul.u32 56, %s10
      $region32: #{fused_matmul.1} parent=27 // pred_fallthru
        _
    $region28: #{fused_matmul.1} parent=5 // pred_fallthru
      _
    %p163 = scmp.le.s32.totalorder 1, %s10
    %p164 = scmp.lt.s32.totalorder %s10, 29
    %p165 = pnand %p163, %p164
    %p166 = pneg %p165
    // Predicated region
    $region33: #{fused_matmul.1} parent=5 // pred_check
      _
    $region34: #{fused_matmul.1} parent=5 // pred_check_branch
      %168 = sbr.rel (%p165) target = $region36
    $region35: #{fused_matmul.1} parent=5 // pred_region
      %s169 = ssub.s32 %s10, 1
      %s170 = smul.u32 56, %s15
      %p171 = scmp.lt.s32.totalorder %s170, 1567
      %s172 = scalar_select %p171, %s170, 1567
      %s173 = smul.addr %s172, 2
      %s174 = smul.addr %s173, 4
      %s175 = scalar_lea.vmem %s0, %s174
      %p176 = pneg %p36
      %p177 = pneg %p33
      %p178 = pneg %p57
      %p179 = pneg %p54
      %p180 = pneg %p78
      %p181 = pneg %p75
      %p182 = pneg %p99
      %p183 = pneg %p96
      %p184 = pneg %p125
      %p185 = pneg %p122
      %s186 = smul.u32 56, %s15
      %p187 = scmp.lt.s32.totalorder %s186, 1567
      %s188 = scalar_select %p187, %s186, 1567
      %s189 = smul.addr %s188, 4
      %s190 = scalar_lea.vmem %s4, %s189
      %s191 = smul.u32 56, %s15
      %p192 = scmp.lt.s32.totalorder %s191, 1567
      %s193 = scalar_select %p192, %s191, 1567
      %s194 = smul.addr %s193, 2
      %s195 = smul.addr %s194, 4
      %s196 = scalar_lea.vmem %s0, %s195
      %s197 = smul.u32 56, %s15
      %s198 = smul.u32 56, %s15
      %p199 = scmp.lt.s32.totalorder %s198, 1567
      %s200 = scalar_select %p199, %s198, 1567
      %s201 = smul.addr %s200, 4
      %s202 = scalar_lea.vmem %s4, %s201
      %s203 = smul.u32 56, %s15
      %v205 = vld [vmem:[%s196] sm:$0xff]
      %v206 = vld [vmem:[%s196 + $0x8] sm:$0xff]
      %v207 = vld [vmem:[%s196 + $0x10] sm:$0xff]
      %v208 = vld [vmem:[%s196 + $0x18] sm:$0xff]
      %v209 = vld [vmem:[%s196 + $0x20] sm:$0xff]
      %v210 = vld [vmem:[%s196 + $0x28] sm:$0xff]
      %v211 = vld [vmem:[%s196 + $0x30] sm:$0xff]
      %v212 = vld [vmem:[%s196 + $0x38] sm:$0xff]
      %v213 = vld [vmem:[%s196 + $0x40] sm:$0xff]
      %v214 = vld [vmem:[%s196 + $0x48] sm:$0xff]
      %v215 = vld [vmem:[%s196 + $0x50] sm:$0xff]
      %v216 = vld [vmem:[%s196 + $0x58] sm:$0xff]
      %v217 = vld [vmem:[%s196 + $0x60] sm:$0xff]
      %v218 = vld [vmem:[%s196 + $0x68] sm:$0xff]
      %v219 = vld [vmem:[%s196 + $0x70] sm:$0xff]
      %v220 = vld [vmem:[%s196 + $0x78] sm:$0xff]
      %v221 = vld [vmem:[%s196 + $0x80] sm:$0xff]
      %v222 = vld [vmem:[%s196 + $0x88] sm:$0xff]
      %v223 = vld [vmem:[%s196 + $0x90] sm:$0xff]
      %v224 = vld [vmem:[%s196 + $0x98] sm:$0xff]
      %v225 = vld [vmem:[%s196 + $0xa0] sm:$0xff]
      %v226 = vld [vmem:[%s196 + $0xa8] sm:$0xff]
      %v227 = vld [vmem:[%s196 + $0xb0] sm:$0xff]
      %v228 = vld [vmem:[%s196 + $0xb8] sm:$0xff]
      %v229 = vld [vmem:[%s196 + $0xc0] sm:$0xff]
      %v230 = vld [vmem:[%s196 + $0xc8] sm:$0xff]
      %v231 = vld [vmem:[%s196 + $0xd0] sm:$0xff]
      %v232 = vld [vmem:[%s196 + $0xd8] sm:$0xff]
      %v233 = vld [vmem:[%s196 + $0xe0] sm:$0xff]
      %v234 = vld [vmem:[%s196 + $0xe8] sm:$0xff]
      %v235 = vld [vmem:[%s196 + $0xf0] sm:$0xff]
      %v236 = vld [vmem:[%s196 + $0xf8] sm:$0xff]
      %v237 = vld [vmem:[%s196 + $0x100] sm:$0xff]
      %v238 = vld [vmem:[%s196 + $0x108] sm:$0xff]
      %v239 = vld [vmem:[%s196 + $0x110] sm:$0xff]
      %v240 = vld [vmem:[%s196 + $0x118] sm:$0xff]
      %v241 = vld [vmem:[%s196 + $0x120] sm:$0xff]
      %v242 = vld [vmem:[%s196 + $0x128] sm:$0xff]
      %v243 = vld [vmem:[%s196 + $0x130] sm:$0xff]
      %v244 = vld [vmem:[%s196 + $0x138] sm:$0xff]
      %v245 = vld [vmem:[%s196 + $0x140] sm:$0xff]
      %v246 = vld [vmem:[%s196 + $0x148] sm:$0xff]
      %v247 = vld [vmem:[%s196 + $0x150] sm:$0xff]
      %v248 = vld [vmem:[%s196 + $0x158] sm:$0xff]
      %v249 = vld [vmem:[%s196 + $0x160] sm:$0xff]
      %v250 = vld [vmem:[%s196 + $0x168] sm:$0xff]
      %v251 = vld [vmem:[%s196 + $0x170] sm:$0xff]
      %v252 = vld [vmem:[%s196 + $0x178] sm:$0xff]
      %v253 = vld [vmem:[%s196 + $0x180] sm:$0xff]
      %v254 = vld [vmem:[%s196 + $0x188] sm:$0xff]
      %v255 = vld [vmem:[%s196 + $0x190] sm:$0xff]
      %v256 = vld [vmem:[%s196 + $0x198] sm:$0xff]
      %v257 = vld [vmem:[%s196 + $0x1a0] sm:$0xff]
      %v258 = vld [vmem:[%s196 + $0x1a8] sm:$0xff]
      %v259 = vld [vmem:[%s196 + $0x1b0] sm:$0xff]
      %v260 = vld [vmem:[%s196 + $0x1b8] sm:$0xff]
      %v261 = vld [vmem:[%s1] sm:$0xf]
      %v262 = vld [vmem:[%s1 + $0x4] sm:$0xf]
      %v263 = vld [vmem:[%s1 + $0x8] sm:$0xf]
      %v264 = vld [vmem:[%s1 + $0xc] sm:$0xf]
      %v265 = vld [vmem:[%s1 + $0x10] sm:$0xf]
      %v266 = vld [vmem:[%s1 + $0x14] sm:$0xf]
      %v267 = vld [vmem:[%s1 + $0x18] sm:$0xf]
      %v268 = vld [vmem:[%s1 + $0x1c] sm:$0xf]
      %v269 = vld [vmem:[%s1 + $0x20] sm:$0xf]
      %v270 = vld [vmem:[%s1 + $0x24] sm:$0xf]
      %v271 = vld [vmem:[%s1 + $0x28] sm:$0xf]
      %v272 = vld [vmem:[%s1 + $0x2c] sm:$0xf]
      %v273 = vld [vmem:[%s1 + $0x30] sm:$0xf]
      %v274 = vld [vmem:[%s1 + $0x34] sm:$0xf]
      %v275 = vld [vmem:[%s1 + $0x38] sm:$0xf]
      %v276 = vld [vmem:[%s1 + $0x3c] sm:$0xf]
      %v277 = vld [vmem:[%s1 + $0x40] sm:$0xf]
      %v278 = vld [vmem:[%s1 + $0x44] sm:$0xf]
      %v279 = vld [vmem:[%s1 + $0x48] sm:$0x3]
      %v336 = vunpack.c.l.b16 %v205
      %v337 = vunpack.c.h.b16 %v205
      %v338 = vunpack.c.l.b16 %v206
      %v339 = vunpack.c.h.b16 %v206
      %v340 = vunpack.c.l.b16 %v207
      %v341 = vunpack.c.h.b16 %v207
      %v342 = vunpack.c.l.b16 %v208
      %v343 = vunpack.c.h.b16 %v208
      %v344 = vunpack.c.l.b16 %v209
      %v345 = vunpack.c.h.b16 %v209
      %v346 = vunpack.c.l.b16 %v210
      %v347 = vunpack.c.h.b16 %v210
      %v348 = vunpack.c.l.b16 %v211
      %v349 = vunpack.c.h.b16 %v211
      %v350 = vunpack.c.l.b16 %v212
      %v351 = vunpack.c.h.b16 %v212
      %v352 = vunpack.c.l.b16 %v213
      %v353 = vunpack.c.h.b16 %v213
      %v354 = vunpack.c.l.b16 %v214
      %v355 = vunpack.c.h.b16 %v214
      %v356 = vunpack.c.l.b16 %v215
      %v357 = vunpack.c.h.b16 %v215
      %v358 = vunpack.c.l.b16 %v216
      %v359 = vunpack.c.h.b16 %v216
      %v360 = vunpack.c.l.b16 %v217
      %v361 = vunpack.c.h.b16 %v217
      %v362 = vunpack.c.l.b16 %v218
      %v363 = vunpack.c.h.b16 %v218
      %v364 = vunpack.c.l.b16 %v219
      %v365 = vunpack.c.h.b16 %v219
      %v366 = vunpack.c.l.b16 %v220
      %v367 = vunpack.c.h.b16 %v220
      %v368 = vunpack.c.l.b16 %v221
      %v369 = vunpack.c.h.b16 %v221
      %v370 = vunpack.c.l.b16 %v222
      %v371 = vunpack.c.h.b16 %v222
      %v372 = vunpack.c.l.b16 %v223
      %v373 = vunpack.c.h.b16 %v223
      %v374 = vunpack.c.l.b16 %v224
      %v375 = vunpack.c.h.b16 %v224
      %v376 = vunpack.c.l.b16 %v225
      %v377 = vunpack.c.h.b16 %v225
      %v378 = vunpack.c.l.b16 %v226
      %v379 = vunpack.c.h.b16 %v226
      %v380 = vunpack.c.l.b16 %v227
      %v381 = vunpack.c.h.b16 %v227
      %v382 = vunpack.c.l.b16 %v228
      %v383 = vunpack.c.h.b16 %v228
      %v384 = vunpack.c.l.b16 %v229
      %v385 = vunpack.c.h.b16 %v229
      %v386 = vunpack.c.l.b16 %v230
      %v387 = vunpack.c.h.b16 %v230
      %v388 = vunpack.c.l.b16 %v231
      %v389 = vunpack.c.h.b16 %v231
      %v390 = vunpack.c.l.b16 %v232
      %v391 = vunpack.c.h.b16 %v232
      %v392 = vunpack.c.l.b16 %v233
      %v393 = vunpack.c.h.b16 %v233
      %v394 = vunpack.c.l.b16 %v234
      %v395 = vunpack.c.h.b16 %v234
      %v396 = vunpack.c.l.b16 %v235
      %v397 = vunpack.c.h.b16 %v235
      %v398 = vunpack.c.l.b16 %v236
      %v399 = vunpack.c.h.b16 %v236
      %v400 = vunpack.c.l.b16 %v237
      %v401 = vunpack.c.h.b16 %v237
      %v402 = vunpack.c.l.b16 %v238
      %v403 = vunpack.c.h.b16 %v238
      %v404 = vunpack.c.l.b16 %v239
      %v405 = vunpack.c.h.b16 %v239
      %v406 = vunpack.c.l.b16 %v240
      %v407 = vunpack.c.h.b16 %v240
      %v408 = vunpack.c.l.b16 %v241
      %v409 = vunpack.c.h.b16 %v241
      %v410 = vunpack.c.l.b16 %v242
      %v411 = vunpack.c.h.b16 %v242
      %v412 = vunpack.c.l.b16 %v243
      %v413 = vunpack.c.h.b16 %v243
      %v414 = vunpack.c.l.b16 %v244
      %v415 = vunpack.c.h.b16 %v244
      %v416 = vunpack.c.l.b16 %v245
      %v417 = vunpack.c.h.b16 %v245
      %v418 = vunpack.c.l.b16 %v246
      %v419 = vunpack.c.h.b16 %v246
      %v420 = vunpack.c.l.b16 %v247
      %v421 = vunpack.c.h.b16 %v247
      %v422 = vunpack.c.l.b16 %v248
      %v423 = vunpack.c.h.b16 %v248
      %v424 = vunpack.c.l.b16 %v249
      %v425 = vunpack.c.h.b16 %v249
      %v426 = vunpack.c.l.b16 %v250
      %v427 = vunpack.c.h.b16 %v250
      %v428 = vunpack.c.l.b16 %v251
      %v429 = vunpack.c.h.b16 %v251
      %v430 = vunpack.c.l.b16 %v252
      %v431 = vunpack.c.h.b16 %v252
      %v432 = vunpack.c.l.b16 %v253
      %v433 = vunpack.c.h.b16 %v253
      %v434 = vunpack.c.l.b16 %v254
      %v435 = vunpack.c.h.b16 %v254
      %v436 = vunpack.c.l.b16 %v255
      %v437 = vunpack.c.h.b16 %v255
      %v438 = vunpack.c.l.b16 %v256
      %v439 = vunpack.c.h.b16 %v256
      %v440 = vunpack.c.l.b16 %v257
      %v441 = vunpack.c.h.b16 %v257
      %v442 = vunpack.c.l.b16 %v258
      %v443 = vunpack.c.h.b16 %v258
      %v444 = vunpack.c.l.b16 %v259
      %v445 = vunpack.c.h.b16 %v259
      %v446 = vunpack.c.l.b16 %v260
      %v447 = vunpack.c.h.b16 %v260
      %v448 = vpack.c.b16 %v338, %v336
      %v449 = vpack.c.b16 %v339, %v337
      %v450 = vpack.c.b16 %v342, %v340
      %v451 = vpack.c.b16 %v343, %v341
      %v452 = vpack.c.b16 %v346, %v344
      %v453 = vpack.c.b16 %v347, %v345
      %v454 = vpack.c.b16 %v350, %v348
      %v455 = vpack.c.b16 %v351, %v349
      %v456 = vpack.c.b16 %v354, %v352
      %v457 = vpack.c.b16 %v355, %v353
      %v458 = vpack.c.b16 %v358, %v356
      %v459 = vpack.c.b16 %v359, %v357
      %v460 = vpack.c.b16 %v362, %v360
      %v461 = vpack.c.b16 %v363, %v361
      %v462 = vpack.c.b16 %v366, %v364
      %v463 = vpack.c.b16 %v367, %v365
      %v464 = vpack.c.b16 %v370, %v368
      %v465 = vpack.c.b16 %v371, %v369
      %v466 = vpack.c.b16 %v374, %v372
      %v467 = vpack.c.b16 %v375, %v373
      %v468 = vpack.c.b16 %v378, %v376
      %v469 = vpack.c.b16 %v379, %v377
      %v470 = vpack.c.b16 %v382, %v380
      %v471 = vpack.c.b16 %v383, %v381
      %v472 = vpack.c.b16 %v386, %v384
      %v473 = vpack.c.b16 %v387, %v385
      %v474 = vpack.c.b16 %v390, %v388
      %v475 = vpack.c.b16 %v391, %v389
      %v476 = vpack.c.b16 %v394, %v392
      %v477 = vpack.c.b16 %v395, %v393
      %v478 = vpack.c.b16 %v398, %v396
      %v479 = vpack.c.b16 %v399, %v397
      %v480 = vpack.c.b16 %v402, %v400
      %v481 = vpack.c.b16 %v403, %v401
      %v482 = vpack.c.b16 %v406, %v404
      %v483 = vpack.c.b16 %v407, %v405
      %v484 = vpack.c.b16 %v410, %v408
      %v485 = vpack.c.b16 %v411, %v409
      %v486 = vpack.c.b16 %v414, %v412
      %v487 = vpack.c.b16 %v415, %v413
      %v488 = vpack.c.b16 %v418, %v416
      %v489 = vpack.c.b16 %v419, %v417
      %v490 = vpack.c.b16 %v422, %v420
      %v491 = vpack.c.b16 %v423, %v421
      %v492 = vpack.c.b16 %v426, %v424
      %v493 = vpack.c.b16 %v427, %v425
      %v494 = vpack.c.b16 %v430, %v428
      %v495 = vpack.c.b16 %v431, %v429
      %v496 = vpack.c.b16 %v434, %v432
      %v497 = vpack.c.b16 %v435, %v433
      %v498 = vpack.c.b16 %v438, %v436
      %v499 = vpack.c.b16 %v439, %v437
      %v500 = vpack.c.b16 %v442, %v440
      %v501 = vpack.c.b16 %v443, %v441
      %v502 = vpack.c.b16 %v446, %v444
      %v503 = vpack.c.b16 %v447, %v445
      %v551 = vunpack.c.l.b16 %v261
      %v552 = vunpack.c.l.b16 %v262
      %v553 = vunpack.c.l.b16 %v263
      %v554 = vunpack.c.l.b16 %v264
      %v555 = vunpack.c.l.b16 %v265
      %v556 = vunpack.c.l.b16 %v266
      %v557 = vunpack.c.l.b16 %v267
      %v558 = vunpack.c.l.b16 %v268
      %v559 = vunpack.c.l.b16 %v269
      %v560 = vunpack.c.l.b16 %v270
      %v561 = vunpack.c.l.b16 %v271
      %v562 = vunpack.c.l.b16 %v272
      %v563 = vunpack.c.l.b16 %v273
      %v564 = vunpack.c.l.b16 %v274
      %v565 = vunpack.c.l.b16 %v275
      %v566 = vunpack.c.l.b16 %v276
      %v567 = vunpack.c.l.b16 %v277
      %v568 = vunpack.c.l.b16 %v278
      %v569 = vunpack.c.l.b16 %v279
      %v570 = vpack.c.b16 %v552, %v551
      %v571 = vpack.c.b16 %v554, %v553
      %v572 = vpack.c.b16 %v556, %v555
      %v573 = vpack.c.b16 %v558, %v557
      %v574 = vpack.c.b16 %v560, %v559
      %v575 = vpack.c.b16 %v562, %v561
      %v576 = vpack.c.b16 %v564, %v563
      %v577 = vpack.c.b16 %v566, %v565
      %v578 = vpack.c.b16 %v568, %v567
      %v579 = vpack.c.b16 %v569, %v569
      %vm589 = vcmask 154624
      %v591 = vsel %vm589, %v449, 0
      %v594 = vsel %vm589, %v451, 0
      %v597 = vsel %vm589, %v453, 0
      %v600 = vsel %vm589, %v455, 0
      %v603 = vsel %vm589, %v457, 0
      %v606 = vsel %vm589, %v459, 0
      %v609 = vsel %vm589, %v461, 0
      %v612 = vsel %vm589, %v463, 0
      %v615 = vsel %vm589, %v465, 0
      %v618 = vsel %vm589, %v467, 0
      %v621 = vsel %vm589, %v469, 0
      %v624 = vsel %vm589, %v471, 0
      %v627 = vsel %vm589, %v473, 0
      %v630 = vsel %vm589, %v475, 0
      %v633 = vsel %vm589, %v477, 0
      %v636 = vsel %vm589, %v479, 0
      %v639 = vsel %vm589, %v481, 0
      %v642 = vsel %vm589, %v483, 0
      %v645 = vsel %vm589, %v485, 0
      %v648 = vsel %vm589, %v487, 0
      %v651 = vsel %vm589, %v489, 0
      %v654 = vsel %vm589, %v491, 0
      %v657 = vsel %vm589, %v493, 0
      %v660 = vsel %vm589, %v495, 0
      %v663 = vsel %vm589, %v497, 0
      %v666 = vsel %vm589, %v499, 0
      %v669 = vsel %vm589, %v501, 0
      %v672 = vsel %vm589, %v503, 0
      %vm674 = vcmask 1040384
      %vm675 = vcmask 1041408
      %v676 = vsel %vm674, 4294967295, 65535
      %v677 = vsel %vm675, %v676, 0
      %v679 = vand.u32 %v579, %v677
      %681 = vmatprep.subr.bf16.mxu0 0
      %682 = vmatpush1.bf16.msra.mxu0 %v577
      %683 = vmatprep.subr.bf16.mxu0 0
      %684 = vmatpush1.bf16.msra.mxu0 %v576
      %685 = vmatprep.subr.bf16.mxu0 0
      %686 = vmatpush1.bf16.msra.mxu0 %v575
      %687 = vmatprep.subr.bf16.mxu0 0
      %688 = vmatpush1.bf16.msra.mxu0 %v574
      %689 = vmatprep.subr.bf16.mxu0 0
      %690 = vmatpush1.bf16.msra.mxu0 %v573
      %691 = vmatprep.subr.bf16.mxu0 0
      %692 = vmatpush1.bf16.msra.mxu0 %v572
      %693 = vmatprep.subr.bf16.mxu0 0
      %694 = vmatpush1.bf16.msra.mxu0 %v571
      %695 = vmatprep.subr.bf16.mxu0 0
      %696 = vmatpush1.bf16.msra.mxu0 %v570
      %697 = vmatprep.subr.bf16.mxu0 0
      %698 = vmatpush2.bf16.msra.mxu0 0
      %699 = vmatprep.subr.bf16.mxu0 0
      %700 = vmatpush2.bf16.msra.mxu0 0
      %701 = vmatprep.subr.bf16.mxu0 0
      %702 = vmatpush2.bf16.msra.mxu0 0
      %703 = vmatprep.subr.bf16.mxu0 0
      %704 = vmatpush2.bf16.msra.mxu0 0
      %705 = vmatprep.subr.bf16.mxu0 0
      %706 = vmatpush2.bf16.msra.mxu0 0
      %707 = vmatprep.subr.bf16.mxu0 0
      %708 = vmatpush2.bf16.msra.mxu0 0
      %709 = vmatprep.subr.bf16.mxu0 0
      %710 = vmatpush2.bf16.msra.mxu0 %v679
      %711 = vmatprep.subr.bf16.mxu0 0
      %712 = vmatpush2.bf16.msra.mxu0 %v578
      %713 = vmatprep.mubr.bf16.mxu0 %v591
      %714 = vmatmul.mubr.bf16.gmra.mxu0 %v448
      %v715 = vpop.f32.mrf.mxu0
      %v716 = vadd.f32 0.0, %v715
      %v717 = vpop.f32.mrf.mxu0
      %v718 = vpop.f32.mrf.mxu0
      %v719 = vadd.f32 0.0, %v718
      %v720 = vpop.f32.mrf.mxu0
      %721 = vmatprep.mubr.bf16.mxu0 %v594
      %722 = vmatmul.mubr.bf16.gmra.mxu0 %v450
      %v723 = vpop.f32.mrf.mxu0
      %v724 = vadd.f32 0.0, %v723
      %v725 = vpop.f32.mrf.mxu0
      %v726 = vpop.f32.mrf.mxu0
      %v727 = vadd.f32 0.0, %v726
      %v728 = vpop.f32.mrf.mxu0
      %729 = vmatprep.mubr.bf16.mxu0 %v597
      %730 = vmatmul.mubr.bf16.gmra.mxu0 %v452
      %v731 = vpop.f32.mrf.mxu0
      %v732 = vadd.f32 0.0, %v731
      %v733 = vpop.f32.mrf.mxu0
      %v734 = vpop.f32.mrf.mxu0
      %v735 = vadd.f32 0.0, %v734
      %v736 = vpop.f32.mrf.mxu0
      %737 = vmatprep.mubr.bf16.mxu0 %v600
      %738 = vmatmul.mubr.bf16.gmra.mxu0 %v454
      %v739 = vpop.f32.mrf.mxu0
      %v740 = vadd.f32 0.0, %v739
      %v741 = vpop.f32.mrf.mxu0
      %v742 = vpop.f32.mrf.mxu0
      %v743 = vadd.f32 0.0, %v742
      %v744 = vpop.f32.mrf.mxu0
      %745 = vmatprep.mubr.bf16.mxu0 %v603
      %746 = vmatmul.mubr.bf16.gmra.mxu0 %v456
      %v747 = vpop.f32.mrf.mxu0
      %v748 = vadd.f32 0.0, %v747
      %v749 = vpop.f32.mrf.mxu0
      %v750 = vpop.f32.mrf.mxu0
      %v751 = vadd.f32 0.0, %v750
      %v752 = vpop.f32.mrf.mxu0
      %753 = vmatprep.mubr.bf16.mxu0 %v606
      %754 = vmatmul.mubr.bf16.gmra.mxu0 %v458
      %v755 = vpop.f32.mrf.mxu0
      %v756 = vadd.f32 0.0, %v755
      %v757 = vpop.f32.mrf.mxu0
      %v758 = vpop.f32.mrf.mxu0
      %v759 = vadd.f32 0.0, %v758
      %v760 = vpop.f32.mrf.mxu0
      %761 = vmatprep.mubr.bf16.mxu0 %v609
      %762 = vmatmul.mubr.bf16.gmra.mxu0 %v460
      %v763 = vpop.f32.mrf.mxu0
      %v764 = vadd.f32 0.0, %v763
      %v765 = vpop.f32.mrf.mxu0
      %v766 = vpop.f32.mrf.mxu0
      %v767 = vadd.f32 0.0, %v766
      %v768 = vpop.f32.mrf.mxu0
      %769 = vmatprep.mubr.bf16.mxu0 %v612
      %770 = vmatmul.mubr.bf16.gmra.mxu0 %v462
      %v771 = vpop.f32.mrf.mxu0
      %v772 = vadd.f32 0.0, %v771
      %v773 = vpop.f32.mrf.mxu0
      %v774 = vpop.f32.mrf.mxu0
      %v775 = vadd.f32 0.0, %v774
      %v776 = vpop.f32.mrf.mxu0
      %777 = vmatprep.mubr.bf16.mxu0 %v615
      %778 = vmatmul.mubr.bf16.gmra.mxu0 %v464
      %v779 = vpop.f32.mrf.mxu0
      %v780 = vadd.f32 0.0, %v779
      %v781 = vpop.f32.mrf.mxu0
      %v782 = vpop.f32.mrf.mxu0
      %v783 = vadd.f32 0.0, %v782
      %v784 = vpop.f32.mrf.mxu0
      %785 = vmatprep.mubr.bf16.mxu0 %v618
      %786 = vmatmul.mubr.bf16.gmra.mxu0 %v466
      %v787 = vpop.f32.mrf.mxu0
      %v788 = vadd.f32 0.0, %v787
      %v789 = vpop.f32.mrf.mxu0
      %v790 = vpop.f32.mrf.mxu0
      %v791 = vadd.f32 0.0, %v790
      %v792 = vpop.f32.mrf.mxu0
      %793 = vmatprep.mubr.bf16.mxu0 %v621
      %794 = vmatmul.mubr.bf16.gmra.mxu0 %v468
      %v795 = vpop.f32.mrf.mxu0
      %v796 = vadd.f32 0.0, %v795
      %v797 = vpop.f32.mrf.mxu0
      %v798 = vpop.f32.mrf.mxu0
      %v799 = vadd.f32 0.0, %v798
      %v800 = vpop.f32.mrf.mxu0
      %801 = vmatprep.mubr.bf16.mxu0 %v624
      %802 = vmatmul.mubr.bf16.gmra.mxu0 %v470
      %v803 = vpop.f32.mrf.mxu0
      %v804 = vadd.f32 0.0, %v803
      %v805 = vpop.f32.mrf.mxu0
      %v806 = vpop.f32.mrf.mxu0
      %v807 = vadd.f32 0.0, %v806
      %v808 = vpop.f32.mrf.mxu0
      %809 = vmatprep.mubr.bf16.mxu0 %v627
      %810 = vmatmul.mubr.bf16.gmra.mxu0 %v472
      %v811 = vpop.f32.mrf.mxu0
      %v812 = vadd.f32 0.0, %v811
      %v813 = vpop.f32.mrf.mxu0
      %v814 = vpop.f32.mrf.mxu0
      %v815 = vadd.f32 0.0, %v814
      %v816 = vpop.f32.mrf.mxu0
      %817 = vmatprep.mubr.bf16.mxu0 %v630
      %818 = vmatmul.mubr.bf16.gmra.mxu0 %v474
      %v819 = vpop.f32.mrf.mxu0
      %v820 = vadd.f32 0.0, %v819
      %v821 = vpop.f32.mrf.mxu0
      %v822 = vpop.f32.mrf.mxu0
      %v823 = vadd.f32 0.0, %v822
      %v824 = vpop.f32.mrf.mxu0
      %825 = vmatprep.mubr.bf16.mxu0 %v633
      %826 = vmatmul.mubr.bf16.gmra.mxu0 %v476
      %v827 = vpop.f32.mrf.mxu0
      %v828 = vadd.f32 0.0, %v827
      %v829 = vpop.f32.mrf.mxu0
      %v830 = vpop.f32.mrf.mxu0
      %v831 = vadd.f32 0.0, %v830
      %v832 = vpop.f32.mrf.mxu0
      %833 = vmatprep.mubr.bf16.mxu0 %v636
      %834 = vmatmul.mubr.bf16.gmra.mxu0 %v478
      %v835 = vpop.f32.mrf.mxu0
      %v836 = vadd.f32 0.0, %v835
      %v837 = vpop.f32.mrf.mxu0
      %v838 = vpop.f32.mrf.mxu0
      %v839 = vadd.f32 0.0, %v838
      %v840 = vpop.f32.mrf.mxu0
      %841 = vmatprep.mubr.bf16.mxu0 %v639
      %842 = vmatmul.mubr.bf16.gmra.mxu0 %v480
      %v843 = vpop.f32.mrf.mxu0
      %v844 = vadd.f32 0.0, %v843
      %v845 = vpop.f32.mrf.mxu0
      %v846 = vpop.f32.mrf.mxu0
      %v847 = vadd.f32 0.0, %v846
      %v848 = vpop.f32.mrf.mxu0
      %849 = vmatprep.mubr.bf16.mxu0 %v642
      %850 = vmatmul.mubr.bf16.gmra.mxu0 %v482
      %v851 = vpop.f32.mrf.mxu0
      %v852 = vadd.f32 0.0, %v851
      %v853 = vpop.f32.mrf.mxu0
      %v854 = vpop.f32.mrf.mxu0
      %v855 = vadd.f32 0.0, %v854
      %v856 = vpop.f32.mrf.mxu0
      %857 = vmatprep.mubr.bf16.mxu0 %v645
      %858 = vmatmul.mubr.bf16.gmra.mxu0 %v484
      %v859 = vpop.f32.mrf.mxu0
      %v860 = vadd.f32 0.0, %v859
      %v861 = vpop.f32.mrf.mxu0
      %v862 = vpop.f32.mrf.mxu0
      %v863 = vadd.f32 0.0, %v862
      %v864 = vpop.f32.mrf.mxu0
      %865 = vmatprep.mubr.bf16.mxu0 %v648
      %866 = vmatmul.mubr.bf16.gmra.mxu0 %v486
      %v867 = vpop.f32.mrf.mxu0
      %v868 = vadd.f32 0.0, %v867
      %v869 = vpop.f32.mrf.mxu0
      %v870 = vpop.f32.mrf.mxu0
      %v871 = vadd.f32 0.0, %v870
      %v872 = vpop.f32.mrf.mxu0
      %873 = vmatprep.mubr.bf16.mxu0 %v651
      %874 = vmatmul.mubr.bf16.gmra.mxu0 %v488
      %v875 = vpop.f32.mrf.mxu0
      %v876 = vadd.f32 0.0, %v875
      %v877 = vpop.f32.mrf.mxu0
      %v878 = vpop.f32.mrf.mxu0
      %v879 = vadd.f32 0.0, %v878
      %v880 = vpop.f32.mrf.mxu0
      %881 = vmatprep.mubr.bf16.mxu0 %v654
      %882 = vmatmul.mubr.bf16.gmra.mxu0 %v490
      %v883 = vpop.f32.mrf.mxu0
      %v884 = vadd.f32 0.0, %v883
      %v885 = vpop.f32.mrf.mxu0
      %v886 = vpop.f32.mrf.mxu0
      %v887 = vadd.f32 0.0, %v886
      %v888 = vpop.f32.mrf.mxu0
      %889 = vmatprep.mubr.bf16.mxu0 %v657
      %890 = vmatmul.mubr.bf16.gmra.mxu0 %v492
      %v891 = vpop.f32.mrf.mxu0
      %v892 = vadd.f32 0.0, %v891
      %v893 = vpop.f32.mrf.mxu0
      %v894 = vpop.f32.mrf.mxu0
      %v895 = vadd.f32 0.0, %v894
      %v896 = vpop.f32.mrf.mxu0
      %897 = vmatprep.mubr.bf16.mxu0 %v660
      %898 = vmatmul.mubr.bf16.gmra.mxu0 %v494
      %v899 = vpop.f32.mrf.mxu0
      %v900 = vadd.f32 0.0, %v899
      %v901 = vpop.f32.mrf.mxu0
      %v902 = vpop.f32.mrf.mxu0
      %v903 = vadd.f32 0.0, %v902
      %v904 = vpop.f32.mrf.mxu0
      %905 = vmatprep.mubr.bf16.mxu0 %v663
      %906 = vmatmul.mubr.bf16.gmra.mxu0 %v496
      %v907 = vpop.f32.mrf.mxu0
      %v908 = vadd.f32 0.0, %v907
      %v909 = vpop.f32.mrf.mxu0
      %v910 = vpop.f32.mrf.mxu0
      %v911 = vadd.f32 0.0, %v910
      %v912 = vpop.f32.mrf.mxu0
      %913 = vmatprep.mubr.bf16.mxu0 %v666
      %914 = vmatmul.mubr.bf16.gmra.mxu0 %v498
      %v915 = vpop.f32.mrf.mxu0
      %v916 = vadd.f32 0.0, %v915
      %v917 = vpop.f32.mrf.mxu0
      %v918 = vpop.f32.mrf.mxu0
      %v919 = vadd.f32 0.0, %v918
      %v920 = vpop.f32.mrf.mxu0
      %921 = vmatprep.mubr.bf16.mxu0 %v669
      %922 = vmatmul.mubr.bf16.gmra.mxu0 %v500
      %v923 = vpop.f32.mrf.mxu0
      %v924 = vadd.f32 0.0, %v923
      %v925 = vpop.f32.mrf.mxu0
      %v926 = vpop.f32.mrf.mxu0
      %v927 = vadd.f32 0.0, %v926
      %v928 = vpop.f32.mrf.mxu0
      %929 = vmatprep.mubr.bf16.mxu0 %v672
      %930 = vmatmul.mubr.bf16.gmra.mxu0 %v502
      %v931 = vpop.f32.mrf.mxu0
      %v932 = vadd.f32 0.0, %v931
      %v933 = vpop.f32.mrf.mxu0
      %v934 = vpop.f32.mrf.mxu0
      %v935 = vadd.f32 0.0, %v934
      %v936 = vpop.f32.mrf.mxu0
      %937 = vdwg.mxu0
      %v938 = vld [vmem:[%s2] sm:$0x1]
      %v940 = vlaneseq
      %v941 = vshrl.u32 %v940, 7
      %v942 = vsub.s32 0, %v941
      %v943 = vrot.slane %v938, %v942
      %v945 = vmul.f32 %v716, %v943
      %v946 = vmul.f32 %v719, %v943
      %v947 = vmul.f32 %v724, %v943
      %v948 = vmul.f32 %v727, %v943
      %v949 = vmul.f32 %v732, %v943
      %v950 = vmul.f32 %v735, %v943
      %v951 = vmul.f32 %v740, %v943
      %v952 = vmul.f32 %v743, %v943
      %v953 = vmul.f32 %v748, %v943
      %v954 = vmul.f32 %v751, %v943
      %v955 = vmul.f32 %v756, %v943
      %v956 = vmul.f32 %v759, %v943
      %v957 = vmul.f32 %v764, %v943
      %v958 = vmul.f32 %v767, %v943
      %v959 = vmul.f32 %v772, %v943
      %v960 = vmul.f32 %v775, %v943
      %v961 = vmul.f32 %v780, %v943
      %v962 = vmul.f32 %v783, %v943
      %v963 = vmul.f32 %v788, %v943
      %v964 = vmul.f32 %v791, %v943
      %v965 = vmul.f32 %v796, %v943
      %v966 = vmul.f32 %v799, %v943
      %v967 = vmul.f32 %v804, %v943
      %v968 = vmul.f32 %v807, %v943
      %v969 = vmul.f32 %v812, %v943
      %v970 = vmul.f32 %v815, %v943
      %v971 = vmul.f32 %v820, %v943
      %v972 = vmul.f32 %v823, %v943
      %v973 = vmul.f32 %v828, %v943
      %v974 = vmul.f32 %v831, %v943
      %v975 = vmul.f32 %v836, %v943
      %v976 = vmul.f32 %v839, %v943
      %v977 = vmul.f32 %v844, %v943
      %v978 = vmul.f32 %v847, %v943
      %v979 = vmul.f32 %v852, %v943
      %v980 = vmul.f32 %v855, %v943
      %v981 = vmul.f32 %v860, %v943
      %v982 = vmul.f32 %v863, %v943
      %v983 = vmul.f32 %v868, %v943
      %v984 = vmul.f32 %v871, %v943
      %v985 = vmul.f32 %v876, %v943
      %v986 = vmul.f32 %v879, %v943
      %v987 = vmul.f32 %v884, %v943
      %v988 = vmul.f32 %v887, %v943
      %v989 = vmul.f32 %v892, %v943
      %v990 = vmul.f32 %v895, %v943
      %v991 = vmul.f32 %v900, %v943
      %v992 = vmul.f32 %v903, %v943
      %v993 = vmul.f32 %v908, %v943
      %v994 = vmul.f32 %v911, %v943
      %v995 = vmul.f32 %v916, %v943
      %v996 = vmul.f32 %v919, %v943
      %v997 = vmul.f32 %v924, %v943
      %v998 = vmul.f32 %v927, %v943
      %v999 = vmul.f32 %v932, %v943
      %v1000 = vmul.f32 %v935, %v943
      %v1001 = vld [vmem:[%s3] sm:$0x1]
      %v1003 = vlaneseq
      %v1004 = vshrl.u32 %v1003, 7
      %v1005 = vsub.s32 0, %v1004
      %v1006 = vrot.slane %v1001, %v1005
      %v1008 = vadd.f32 %v945, %v1006
      %v1009 = vadd.f32 %v946, %v1006
      %v1010 = vadd.f32 %v947, %v1006
      %v1011 = vadd.f32 %v948, %v1006
      %v1012 = vadd.f32 %v949, %v1006
      %v1013 = vadd.f32 %v950, %v1006
      %v1014 = vadd.f32 %v951, %v1006
      %v1015 = vadd.f32 %v952, %v1006
      %v1016 = vadd.f32 %v953, %v1006
      %v1017 = vadd.f32 %v954, %v1006
      %v1018 = vadd.f32 %v955, %v1006
      %v1019 = vadd.f32 %v956, %v1006
      %v1020 = vadd.f32 %v957, %v1006
      %v1021 = vadd.f32 %v958, %v1006
      %v1022 = vadd.f32 %v959, %v1006
      %v1023 = vadd.f32 %v960, %v1006
      %v1024 = vadd.f32 %v961, %v1006
      %v1025 = vadd.f32 %v962, %v1006
      %v1026 = vadd.f32 %v963, %v1006
      %v1027 = vadd.f32 %v964, %v1006
      %v1028 = vadd.f32 %v965, %v1006
      %v1029 = vadd.f32 %v966, %v1006
      %v1030 = vadd.f32 %v967, %v1006
      %v1031 = vadd.f32 %v968, %v1006
      %v1032 = vadd.f32 %v969, %v1006
      %v1033 = vadd.f32 %v970, %v1006
      %v1034 = vadd.f32 %v971, %v1006
      %v1035 = vadd.f32 %v972, %v1006
      %v1036 = vadd.f32 %v973, %v1006
      %v1037 = vadd.f32 %v974, %v1006
      %v1038 = vadd.f32 %v975, %v1006
      %v1039 = vadd.f32 %v976, %v1006
      %v1040 = vadd.f32 %v977, %v1006
      %v1041 = vadd.f32 %v978, %v1006
      %v1042 = vadd.f32 %v979, %v1006
      %v1043 = vadd.f32 %v980, %v1006
      %v1044 = vadd.f32 %v981, %v1006
      %v1045 = vadd.f32 %v982, %v1006
      %v1046 = vadd.f32 %v983, %v1006
      %v1047 = vadd.f32 %v984, %v1006
      %v1048 = vadd.f32 %v985, %v1006
      %v1049 = vadd.f32 %v986, %v1006
      %v1050 = vadd.f32 %v987, %v1006
      %v1051 = vadd.f32 %v988, %v1006
      %v1052 = vadd.f32 %v989, %v1006
      %v1053 = vadd.f32 %v990, %v1006
      %v1054 = vadd.f32 %v991, %v1006
      %v1055 = vadd.f32 %v992, %v1006
      %v1056 = vadd.f32 %v993, %v1006
      %v1057 = vadd.f32 %v994, %v1006
      %v1058 = vadd.f32 %v995, %v1006
      %v1059 = vadd.f32 %v996, %v1006
      %v1060 = vadd.f32 %v997, %v1006
      %v1061 = vadd.f32 %v998, %v1006
      %v1062 = vadd.f32 %v999, %v1006
      %v1063 = vadd.f32 %v1000, %v1006
      %v1064 = vmax.f32 %v1008, 0.0
      %v1065 = vmax.f32 %v1009, 0.0
      %v1066 = vmax.f32 %v1010, 0.0
      %v1067 = vmax.f32 %v1011, 0.0
      %v1068 = vmax.f32 %v1012, 0.0
      %v1069 = vmax.f32 %v1013, 0.0
      %v1070 = vmax.f32 %v1014, 0.0
      %v1071 = vmax.f32 %v1015, 0.0
      %v1072 = vmax.f32 %v1016, 0.0
      %v1073 = vmax.f32 %v1017, 0.0
      %v1074 = vmax.f32 %v1018, 0.0
      %v1075 = vmax.f32 %v1019, 0.0
      %v1076 = vmax.f32 %v1020, 0.0
      %v1077 = vmax.f32 %v1021, 0.0
      %v1078 = vmax.f32 %v1022, 0.0
      %v1079 = vmax.f32 %v1023, 0.0
      %v1080 = vmax.f32 %v1024, 0.0
      %v1081 = vmax.f32 %v1025, 0.0
      %v1082 = vmax.f32 %v1026, 0.0
      %v1083 = vmax.f32 %v1027, 0.0
      %v1084 = vmax.f32 %v1028, 0.0
      %v1085 = vmax.f32 %v1029, 0.0
      %v1086 = vmax.f32 %v1030, 0.0
      %v1087 = vmax.f32 %v1031, 0.0
      %v1088 = vmax.f32 %v1032, 0.0
      %v1089 = vmax.f32 %v1033, 0.0
      %v1090 = vmax.f32 %v1034, 0.0
      %v1091 = vmax.f32 %v1035, 0.0
      %v1092 = vmax.f32 %v1036, 0.0
      %v1093 = vmax.f32 %v1037, 0.0
      %v1094 = vmax.f32 %v1038, 0.0
      %v1095 = vmax.f32 %v1039, 0.0
      %v1096 = vmax.f32 %v1040, 0.0
      %v1097 = vmax.f32 %v1041, 0.0
      %v1098 = vmax.f32 %v1042, 0.0
      %v1099 = vmax.f32 %v1043, 0.0
      %v1100 = vmax.f32 %v1044, 0.0
      %v1101 = vmax.f32 %v1045, 0.0
      %v1102 = vmax.f32 %v1046, 0.0
      %v1103 = vmax.f32 %v1047, 0.0
      %v1104 = vmax.f32 %v1048, 0.0
      %v1105 = vmax.f32 %v1049, 0.0
      %v1106 = vmax.f32 %v1050, 0.0
      %v1107 = vmax.f32 %v1051, 0.0
      %v1108 = vmax.f32 %v1052, 0.0
      %v1109 = vmax.f32 %v1053, 0.0
      %v1110 = vmax.f32 %v1054, 0.0
      %v1111 = vmax.f32 %v1055, 0.0
      %v1112 = vmax.f32 %v1056, 0.0
      %v1113 = vmax.f32 %v1057, 0.0
      %v1114 = vmax.f32 %v1058, 0.0
      %v1115 = vmax.f32 %v1059, 0.0
      %v1116 = vmax.f32 %v1060, 0.0
      %v1117 = vmax.f32 %v1061, 0.0
      %v1118 = vmax.f32 %v1062, 0.0
      %v1119 = vmax.f32 %v1063, 0.0
      %v1120 = vpack.c.bf16 %v1065, %v1064
      %v1121 = vpack.c.bf16 %v1067, %v1066
      %v1122 = vpack.c.bf16 %v1069, %v1068
      %v1123 = vpack.c.bf16 %v1071, %v1070
      %v1124 = vpack.c.bf16 %v1073, %v1072
      %v1125 = vpack.c.bf16 %v1075, %v1074
      %v1126 = vpack.c.bf16 %v1077, %v1076
      %v1127 = vpack.c.bf16 %v1079, %v1078
      %v1128 = vpack.c.bf16 %v1081, %v1080
      %v1129 = vpack.c.bf16 %v1083, %v1082
      %v1130 = vpack.c.bf16 %v1085, %v1084
      %v1131 = vpack.c.bf16 %v1087, %v1086
      %v1132 = vpack.c.bf16 %v1089, %v1088
      %v1133 = vpack.c.bf16 %v1091, %v1090
      %v1134 = vpack.c.bf16 %v1093, %v1092
      %v1135 = vpack.c.bf16 %v1095, %v1094
      %v1136 = vpack.c.bf16 %v1097, %v1096
      %v1137 = vpack.c.bf16 %v1099, %v1098
      %v1138 = vpack.c.bf16 %v1101, %v1100
      %v1139 = vpack.c.bf16 %v1103, %v1102
      %v1140 = vpack.c.bf16 %v1105, %v1104
      %v1141 = vpack.c.bf16 %v1107, %v1106
      %v1142 = vpack.c.bf16 %v1109, %v1108
      %v1143 = vpack.c.bf16 %v1111, %v1110
      %v1144 = vpack.c.bf16 %v1113, %v1112
      %v1145 = vpack.c.bf16 %v1115, %v1114
      %v1146 = vpack.c.bf16 %v1117, %v1116
      %v1147 = vpack.c.bf16 %v1119, %v1118
      %v1176 = vunpack.c.l.b16 %v1120
      %v1177 = vunpack.c.h.b16 %v1120
      %v1178 = vunpack.c.l.b16 %v1121
      %v1179 = vunpack.c.h.b16 %v1121
      %v1180 = vunpack.c.l.b16 %v1122
      %v1181 = vunpack.c.h.b16 %v1122
      %v1182 = vunpack.c.l.b16 %v1123
      %v1183 = vunpack.c.h.b16 %v1123
      %v1184 = vunpack.c.l.b16 %v1124
      %v1185 = vunpack.c.h.b16 %v1124
      %v1186 = vunpack.c.l.b16 %v1125
      %v1187 = vunpack.c.h.b16 %v1125
      %v1188 = vunpack.c.l.b16 %v1126
      %v1189 = vunpack.c.h.b16 %v1126
      %v1190 = vunpack.c.l.b16 %v1127
      %v1191 = vunpack.c.h.b16 %v1127
      %v1192 = vunpack.c.l.b16 %v1128
      %v1193 = vunpack.c.h.b16 %v1128
      %v1194 = vunpack.c.l.b16 %v1129
      %v1195 = vunpack.c.h.b16 %v1129
      %v1196 = vunpack.c.l.b16 %v1130
      %v1197 = vunpack.c.h.b16 %v1130
      %v1198 = vunpack.c.l.b16 %v1131
      %v1199 = vunpack.c.h.b16 %v1131
      %v1200 = vunpack.c.l.b16 %v1132
      %v1201 = vunpack.c.h.b16 %v1132
      %v1202 = vunpack.c.l.b16 %v1133
      %v1203 = vunpack.c.h.b16 %v1133
      %v1204 = vunpack.c.l.b16 %v1134
      %v1205 = vunpack.c.h.b16 %v1134
      %v1206 = vunpack.c.l.b16 %v1135
      %v1207 = vunpack.c.h.b16 %v1135
      %v1208 = vunpack.c.l.b16 %v1136
      %v1209 = vunpack.c.h.b16 %v1136
      %v1210 = vunpack.c.l.b16 %v1137
      %v1211 = vunpack.c.h.b16 %v1137
      %v1212 = vunpack.c.l.b16 %v1138
      %v1213 = vunpack.c.h.b16 %v1138
      %v1214 = vunpack.c.l.b16 %v1139
      %v1215 = vunpack.c.h.b16 %v1139
      %v1216 = vunpack.c.l.b16 %v1140
      %v1217 = vunpack.c.h.b16 %v1140
      %v1218 = vunpack.c.l.b16 %v1141
      %v1219 = vunpack.c.h.b16 %v1141
      %v1220 = vunpack.c.l.b16 %v1142
      %v1221 = vunpack.c.h.b16 %v1142
      %v1222 = vunpack.c.l.b16 %v1143
      %v1223 = vunpack.c.h.b16 %v1143
      %v1224 = vunpack.c.l.b16 %v1144
      %v1225 = vunpack.c.h.b16 %v1144
      %v1226 = vunpack.c.l.b16 %v1145
      %v1227 = vunpack.c.h.b16 %v1145
      %v1228 = vunpack.c.l.b16 %v1146
      %v1229 = vunpack.c.h.b16 %v1146
      %v1230 = vunpack.c.l.b16 %v1147
      %v1231 = vunpack.c.h.b16 %v1147
      %v1232 = vpack.c.b16 %v1176, %v1176
      %v1233 = vpack.c.b16 %v1177, %v1177
      %v1234 = vpack.c.b16 %v1178, %v1178
      %v1235 = vpack.c.b16 %v1179, %v1179
      %v1236 = vpack.c.b16 %v1180, %v1180
      %v1237 = vpack.c.b16 %v1181, %v1181
      %v1238 = vpack.c.b16 %v1182, %v1182
      %v1239 = vpack.c.b16 %v1183, %v1183
      %v1240 = vpack.c.b16 %v1184, %v1184
      %v1241 = vpack.c.b16 %v1185, %v1185
      %v1242 = vpack.c.b16 %v1186, %v1186
      %v1243 = vpack.c.b16 %v1187, %v1187
      %v1244 = vpack.c.b16 %v1188, %v1188
      %v1245 = vpack.c.b16 %v1189, %v1189
      %v1246 = vpack.c.b16 %v1190, %v1190
      %v1247 = vpack.c.b16 %v1191, %v1191
      %v1248 = vpack.c.b16 %v1192, %v1192
      %v1249 = vpack.c.b16 %v1193, %v1193
      %v1250 = vpack.c.b16 %v1194, %v1194
      %v1251 = vpack.c.b16 %v1195, %v1195
      %v1252 = vpack.c.b16 %v1196, %v1196
      %v1253 = vpack.c.b16 %v1197, %v1197
      %v1254 = vpack.c.b16 %v1198, %v1198
      %v1255 = vpack.c.b16 %v1199, %v1199
      %v1256 = vpack.c.b16 %v1200, %v1200
      %v1257 = vpack.c.b16 %v1201, %v1201
      %v1258 = vpack.c.b16 %v1202, %v1202
      %v1259 = vpack.c.b16 %v1203, %v1203
      %v1260 = vpack.c.b16 %v1204, %v1204
      %v1261 = vpack.c.b16 %v1205, %v1205
      %v1262 = vpack.c.b16 %v1206, %v1206
      %v1263 = vpack.c.b16 %v1207, %v1207
      %v1264 = vpack.c.b16 %v1208, %v1208
      %v1265 = vpack.c.b16 %v1209, %v1209
      %v1266 = vpack.c.b16 %v1210, %v1210
      %v1267 = vpack.c.b16 %v1211, %v1211
      %v1268 = vpack.c.b16 %v1212, %v1212
      %v1269 = vpack.c.b16 %v1213, %v1213
      %v1270 = vpack.c.b16 %v1214, %v1214
      %v1271 = vpack.c.b16 %v1215, %v1215
      %v1272 = vpack.c.b16 %v1216, %v1216
      %v1273 = vpack.c.b16 %v1217, %v1217
      %v1274 = vpack.c.b16 %v1218, %v1218
      %v1275 = vpack.c.b16 %v1219, %v1219
      %v1276 = vpack.c.b16 %v1220, %v1220
      %v1277 = vpack.c.b16 %v1221, %v1221
      %v1278 = vpack.c.b16 %v1222, %v1222
      %v1279 = vpack.c.b16 %v1223, %v1223
      %v1280 = vpack.c.b16 %v1224, %v1224
      %v1281 = vpack.c.b16 %v1225, %v1225
      %v1282 = vpack.c.b16 %v1226, %v1226
      %v1283 = vpack.c.b16 %v1227, %v1227
      %v1284 = vpack.c.b16 %v1228, %v1228
      %v1285 = vpack.c.b16 %v1229, %v1229
      %v1286 = vpack.c.b16 %v1230, %v1230
      %v1287 = vpack.c.b16 %v1231, %v1231
      %vm1344 = vcmask 519168
      %1345 = vst.msk [vmem:[%s202] sm:$0xf] %vm1344, %v1232
      %1346 = vst.msk [vmem:[%s202 + $0x4] sm:$0xf] %vm1344, %v1233
      %1347 = vst.msk [vmem:[%s202 + $0x8] sm:$0xf] %vm1344, %v1234
      %1348 = vst.msk [vmem:[%s202 + $0xc] sm:$0xf] %vm1344, %v1235
      %1349 = vst.msk [vmem:[%s202 + $0x10] sm:$0xf] %vm1344, %v1236
      %1350 = vst.msk [vmem:[%s202 + $0x14] sm:$0xf] %vm1344, %v1237
      %1351 = vst.msk [vmem:[%s202 + $0x18] sm:$0xf] %vm1344, %v1238
      %1352 = vst.msk [vmem:[%s202 + $0x1c] sm:$0xf] %vm1344, %v1239
      %1353 = vst.msk [vmem:[%s202 + $0x20] sm:$0xf] %vm1344, %v1240
      %1354 = vst.msk [vmem:[%s202 + $0x24] sm:$0xf] %vm1344, %v1241
      %1355 = vst.msk [vmem:[%s202 + $0x28] sm:$0xf] %vm1344, %v1242
      %1356 = vst.msk [vmem:[%s202 + $0x2c] sm:$0xf] %vm1344, %v1243
      %1357 = vst.msk [vmem:[%s202 + $0x30] sm:$0xf] %vm1344, %v1244
      %1358 = vst.msk [vmem:[%s202 + $0x34] sm:$0xf] %vm1344, %v1245
      %1359 = vst.msk [vmem:[%s202 + $0x38] sm:$0xf] %vm1344, %v1246
      %1360 = vst.msk [vmem:[%s202 + $0x3c] sm:$0xf] %vm1344, %v1247
      %1361 = vst.msk [vmem:[%s202 + $0x40] sm:$0xf] %vm1344, %v1248
      %1362 = vst.msk [vmem:[%s202 + $0x44] sm:$0xf] %vm1344, %v1249
      %1363 = vst.msk [vmem:[%s202 + $0x48] sm:$0xf] %vm1344, %v1250
      %1364 = vst.msk [vmem:[%s202 + $0x4c] sm:$0xf] %vm1344, %v1251
      %1365 = vst.msk [vmem:[%s202 + $0x50] sm:$0xf] %vm1344, %v1252
      %1366 = vst.msk [vmem:[%s202 + $0x54] sm:$0xf] %vm1344, %v1253
      %1367 = vst.msk [vmem:[%s202 + $0x58] sm:$0xf] %vm1344, %v1254
      %1368 = vst.msk [vmem:[%s202 + $0x5c] sm:$0xf] %vm1344, %v1255
      %1369 = vst.msk [vmem:[%s202 + $0x60] sm:$0xf] %vm1344, %v1256
      %1370 = vst.msk [vmem:[%s202 + $0x64] sm:$0xf] %vm1344, %v1257
      %1371 = vst.msk [vmem:[%s202 + $0x68] sm:$0xf] %vm1344, %v1258
      %1372 = vst.msk [vmem:[%s202 + $0x6c] sm:$0xf] %vm1344, %v1259
      %1373 = vst.msk [vmem:[%s202 + $0x70] sm:$0xf] %vm1344, %v1260
      %1374 = vst.msk [vmem:[%s202 + $0x74] sm:$0xf] %vm1344, %v1261
      %1375 = vst.msk [vmem:[%s202 + $0x78] sm:$0xf] %vm1344, %v1262
      %1376 = vst.msk [vmem:[%s202 + $0x7c] sm:$0xf] %vm1344, %v1263
      %1377 = vst.msk [vmem:[%s202 + $0x80] sm:$0xf] %vm1344, %v1264
      %1378 = vst.msk [vmem:[%s202 + $0x84] sm:$0xf] %vm1344, %v1265
      %1379 = vst.msk [vmem:[%s202 + $0x88] sm:$0xf] %vm1344, %v1266
      %1380 = vst.msk [vmem:[%s202 + $0x8c] sm:$0xf] %vm1344, %v1267
      %1381 = vst.msk [vmem:[%s202 + $0x90] sm:$0xf] %vm1344, %v1268
      %1382 = vst.msk [vmem:[%s202 + $0x94] sm:$0xf] %vm1344, %v1269
      %1383 = vst.msk [vmem:[%s202 + $0x98] sm:$0xf] %vm1344, %v1270
      %1384 = vst.msk [vmem:[%s202 + $0x9c] sm:$0xf] %vm1344, %v1271
      %1385 = vst.msk [vmem:[%s202 + $0xa0] sm:$0xf] %vm1344, %v1272
      %1386 = vst.msk [vmem:[%s202 + $0xa4] sm:$0xf] %vm1344, %v1273
      %1387 = vst.msk [vmem:[%s202 + $0xa8] sm:$0xf] %vm1344, %v1274
      %1388 = vst.msk [vmem:[%s202 + $0xac] sm:$0xf] %vm1344, %v1275
      %1389 = vst.msk [vmem:[%s202 + $0xb0] sm:$0xf] %vm1344, %v1276
      %1390 = vst.msk [vmem:[%s202 + $0xb4] sm:$0xf] %vm1344, %v1277
      %1391 = vst.msk [vmem:[%s202 + $0xb8] sm:$0xf] %vm1344, %v1278
      %1392 = vst.msk [vmem:[%s202 + $0xbc] sm:$0xf] %vm1344, %v1279
      %1393 = vst.msk [vmem:[%s202 + $0xc0] sm:$0xf] %vm1344, %v1280
      %1394 = vst.msk [vmem:[%s202 + $0xc4] sm:$0xf] %vm1344, %v1281
      %1395 = vst.msk [vmem:[%s202 + $0xc8] sm:$0xf] %vm1344, %v1282
      %1396 = vst.msk [vmem:[%s202 + $0xcc] sm:$0xf] %vm1344, %v1283
      %1397 = vst.msk [vmem:[%s202 + $0xd0] sm:$0xf] %vm1344, %v1284
      %1398 = vst.msk [vmem:[%s202 + $0xd4] sm:$0xf] %vm1344, %v1285
      %1399 = vst.msk [vmem:[%s202 + $0xd8] sm:$0xf] %vm1344, %v1286
      %1400 = vst.msk [vmem:[%s202 + $0xdc] sm:$0xf] %vm1344, %v1287
      %s1401 = smul.u32 56, %s15
      %p1402 = scmp.lt.s32.totalorder %s1401, 1567
      %s1403 = scalar_select %p1402, %s1401, 1567
      %s1404 = smul.addr %s1403, 4
      %s1405 = scalar_lea.vmem %s4, %s1404
      // Predicated region
      $region37: #{fused_matmul.1} parent=35 // pred_check
        %p1406 = pneg %p122
      $region38: #{fused_matmul.1} parent=35 // pred_check_branch
        %1408 = sbr.rel (%p1406) target = $region40
      $region39: #{fused_matmul.1} parent=35 // pred_region
        %s1409 = smul.u32 56, %s15
      $region40: #{fused_matmul.1} parent=35 // pred_fallthru
        _
    $region36: #{fused_matmul.1} parent=5 // pred_fallthru
      _
    %p1410 = scmp.le.s32.totalorder 2, %s10
    // Predicated region
    $region41: #{fused_matmul.1} parent=5 // pred_check
      %p1411 = pneg %p1410
    $region42: #{fused_matmul.1} parent=5 // pred_check_branch
      %1413 = sbr.rel (%p1411) target = $region44
    $region43: #{fused_matmul.1} parent=5 // pred_region
      %s1414 = ssub.s32 %s10, 2
      // Predicated region
      $region45: #{fused_matmul.1} parent=43 // pred_check
        %p1415 = pneg %p128
      $region46: #{fused_matmul.1} parent=43 // pred_check_branch
        %1417 = sbr.rel (%p1415) target = $region48
      $region47: #{fused_matmul.1} parent=43 // pred_region
        %s1418 = smul.u32 56, %s16
        %p1419 = scmp.lt.s32.totalorder %s1418, 1567
        %s1420 = scalar_select %p1419, %s1418, 1567
        %s1421 = smul.addr %s1420, 4
        %s1422 = scalar_lea.vmem %s4, %s1421
      $region48: #{fused_matmul.1} parent=43 // pred_fallthru
        _
    $region44: #{fused_matmul.1} parent=5 // pred_fallthru
      _
  $region6: #{fused_matmul.1} parent=0 // loop_footer
    %s14 = sadd.s32 1, %s10
  $region7: #{fused_matmul.1} parent=0 // loop_footer_branch
    %9 = sbr.rel target = $region3
  $region8: #{fused_matmul.1} parent=0 // loop_exit
    _

</llo_original>
